<compile_context>
chip_gen: v5e
topology: v5e:2x2
jax: 0.10.0
libtpu: 0.0.40
codegen_flags: <defaults>
</compile_context>

<pallas_src>
import jax
import jax.numpy as jnp
from jax.experimental import pallas as pl
from jax.experimental.pallas import tpu as pltpu


def _relation_matching_kernel(vis_ref, lang_ref, mask_ref, sel_ref, gat_ref,
                              wv1_ref, bv1_ref, wv2_ref, bv2_ref,
                              wl1_ref, bl1_ref, wl2_ref, bl2_ref,
                              cos_ref, ixs_ref):
    f32 = jnp.float32
    tb, m = mask_ref.shape
    wdtype = wv2_ref.dtype

    v = vis_ref[...]                                      # (TB*m, vis_dim)
    l = lang_ref[...]                                     # (TB,   lang_dim)

    # visual MLP: Linear(+folded BN) -> ReLU -> Linear(+folded BN), f32 accumulation
    hv = jnp.maximum(
        jnp.dot(v, wv1_ref[...], preferred_element_type=f32) + bv1_ref[...], 0.0)
    ev = jnp.dot(hv.astype(wdtype), wv2_ref[...],
                 preferred_element_type=f32) + bv2_ref[...]          # (TB*m, J)

    # language MLP: computed ONCE per batch element (not once per candidate)
    hl = jnp.maximum(
        jnp.dot(l, wl1_ref[...], preferred_element_type=f32) + bl1_ref[...], 0.0)
    el = jnp.dot(hl.astype(wdtype), wl2_ref[...],
                 preferred_element_type=f32) + bl2_ref[...]          # (TB, J)

    # F.normalize(p=2, dim=1): x * rsqrt(max(||x||^2, 1e-24)) == x / max(||x||, 1e-12)
    vn = ev * jax.lax.rsqrt(
        jnp.maximum(jnp.sum(ev * ev, axis=-1, keepdims=True), 1e-24))
    ln = el * jax.lax.rsqrt(
        jnp.maximum(jnp.sum(el * el, axis=-1, keepdims=True), 1e-24))

    # cos[b, r] = <ln[b], vn[b*m + r]> produced directly in (TB, m) layout
    # (m on the lane axis) with no in-kernel reshape:
    #   P   = ln @ vn^T                      -> (TB, TB*m)  (MXU, all pairs)
    #   cos = (P * sel) @ gather             -> (TB, m)     (block-diagonal extract)
    p = jax.lax.dot_general(ln, vn, (((1,), (1,)), ((), ())),
                            preferred_element_type=f32)             # (TB, TB*m)
    cos = jnp.dot(p * sel_ref[...], gat_ref[...],
                  preferred_element_type=f32)                        # (TB, m)

    cosm = mask_ref[...] * cos                                       # (TB, m)

    # max + first-index argmax over the m candidates (lane-axis reductions)
    maxval = jnp.max(cosm, axis=-1, keepdims=True)                   # (TB, 1)
    cand = jax.lax.broadcasted_iota(jnp.int32, (tb, m), 1)
    ix = jnp.min(jnp.where(cosm == maxval, cand, m),
                 axis=-1, keepdims=True)                             # (TB, 1)

    cos_ref[...] = maxval
    ixs_ref[...] = ix.astype(jnp.int32)


def relation_matching(visual_input, lang_input, masks, params, *,
                      block_b=16, compute_dtype=jnp.bfloat16):
    n, m, vis_dim = visual_input.shape
    lang_dim = lang_input.shape[1]
    f32 = jnp.float32

    # Batch tile: multiple of 16 so bf16 (16,128) / f32 (8,128) sublane tiling is
    # clean.  On v7x pick block_b <= n/2 so the 2 TensorCores each take grid steps.
    tb = max(16, -(-block_b // 16) * 16)
    n_pad = -(-n // tb) * tb

    vis = visual_input.astype(compute_dtype)
    lang = lang_input.astype(compute_dtype)
    msk = masks.astype(f32)
    if n_pad != n:
        pad = n_pad - n
        vis = jnp.concatenate([vis, jnp.zeros((pad, m, vis_dim), compute_dtype)], 0)
        lang = jnp.concatenate([lang, jnp.zeros((pad, lang_dim), compute_dtype)], 0)
        msk = jnp.concatenate([msk, jnp.zeros((pad, m), f32)], 0)
    vis_flat = vis.reshape(n_pad * m, vis_dim)

    # Constant 0/1 selector matrices for the block-diagonal extraction (tiny,
    # resident across the grid like the weights).
    sel = jnp.repeat(jnp.eye(tb, dtype=f32), m, axis=1)    # (tb, tb*m): sel[b,c]=[c//m==b]
    gat = jnp.tile(jnp.eye(m, dtype=f32), (tb, 1))         # (tb*m, m):  gat[c,r]=[c%m==r]

    wv1 = params["wv1"].astype(compute_dtype)
    wv2 = params["wv2"].astype(compute_dtype)
    wl1 = params["wl1"].astype(compute_dtype)
    wl2 = params["wl2"].astype(compute_dtype)
    bv1 = params["bv1"].astype(f32)
    bv2 = params["bv2"].astype(f32)
    bl1 = params["bl1"].astype(f32)
    bl2 = params["bl2"].astype(f32)

    full = lambda a: pl.BlockSpec(a.shape, lambda i: (0, 0))
    in_specs = [
        pl.BlockSpec((tb * m, vis_dim), lambda i: (i, 0)),   # vis rows of TB batches
        pl.BlockSpec((tb, lang_dim), lambda i: (i, 0)),      # one lang row per batch
        pl.BlockSpec((tb, m), lambda i: (i, 0)),             # lane-dense masks
        full(sel), full(gat),
        full(wv1), full(bv1), full(wv2), full(bv2),
        full(wl1), full(bl1), full(wl2), full(bl2),
    ]
    out_specs = [
        pl.BlockSpec((tb, 1), lambda i: (i, 0)),
        pl.BlockSpec((tb, 1), lambda i: (i, 0)),
    ]
    out_shape = [
        jax.ShapeDtypeStruct((n_pad, 1), f32),
        jax.ShapeDtypeStruct((n_pad, 1), jnp.int32),
    ]

    cossim, ixs = pl.pallas_call(
        _relation_matching_kernel,
        grid=(n_pad // tb,),
        in_specs=in_specs,
        out_specs=out_specs,
        out_shape=out_shape,
        compiler_params=pltpu.CompilerParams(dimension_semantics=("parallel",)),
    )(vis_flat, lang, msk, sel, gat,
      wv1, bv1, wv2, bv2, wl1, bl1, wl2, bl2)

    return cossim[:n], ixs[:n, 0]


def _fold_linear_bn(w, b, gamma, beta, mean, var, eps=1e-5):
    """Fold eval-mode BatchNorm1d into the preceding Linear (glue, plain JAX)."""
    scale = gamma / jnp.sqrt(var + eps)                 # (out,)
    w_f = w * scale[None, :]
    b_f = (b - mean) * scale + beta
    return w_f, b_f.reshape(1, -1)


def make_params(key, vis_dim, lang_dim, jemb_dim):
    ks = jax.random.split(key, 16)
    def lin(din, dout, i):
        w = 0.1 * jax.random.normal(ks[i], (din, dout), jnp.float32)
        b = 0.05 * jax.random.normal(ks[i + 1], (dout,), jnp.float32)
        return w, b
    def bn(i, d):
        gamma = 1.0 + 0.1 * jax.random.normal(ks[i], (d,), jnp.float32)
        beta = 0.05 * jax.random.normal(ks[i + 1], (d,), jnp.float32)
        mean = 0.02 * jax.random.normal(ks[i + 2], (d,), jnp.float32)
        var = 0.5 + jnp.abs(0.5 * jax.random.normal(ks[i + 3], (d,), jnp.float32))
        return gamma, beta, mean, var

    wv1, bv1 = lin(vis_dim, jemb_dim, 0)
    wv2, bv2 = lin(jemb_dim, jemb_dim, 2)
    wl1, bl1 = lin(lang_dim, jemb_dim, 4)
    wl2, bl2 = lin(jemb_dim, jemb_dim, 6)
    bnv1 = bn(8, jemb_dim)
    bnv2 = bn(10, jemb_dim)
    bnl1 = bn(12, jemb_dim)
    bnl2 = bn(14, jemb_dim)

    wv1f, bv1f = _fold_linear_bn(wv1, bv1, *bnv1)
    wv2f, bv2f = _fold_linear_bn(wv2, bv2, *bnv2)
    wl1f, bl1f = _fold_linear_bn(wl1, bl1, *bnl1)
    wl2f, bl2f = _fold_linear_bn(wl2, bl2, *bnl2)
    return dict(wv1=wv1f, bv1=bv1f, wv2=wv2f, bv2=bv2f,
                wl1=wl1f, bl1=bl1f, wl2=wl2f, bl2=bl2f)


def reference(visual_input, lang_input, masks, p, *, compute_dtype=jnp.bfloat16):
    """Pure-JAX reference of the eval-mode torch forward, matching the kernel's
    bf16-in / f32-accumulate recipe (folded-BN params)."""
    f32 = jnp.float32
    n, m, vd = visual_input.shape
    v = visual_input.astype(compute_dtype).reshape(n * m, vd)
    l = lang_input.astype(compute_dtype)
    wv1 = p["wv1"].astype(compute_dtype); wv2 = p["wv2"].astype(compute_dtype)
    wl1 = p["wl1"].astype(compute_dtype); wl2 = p["wl2"].astype(compute_dtype)

    hv = jnp.maximum(jnp.dot(v, wv1, preferred_element_type=f32) + p["bv1"], 0.0)
    ev = jnp.dot(hv.astype(compute_dtype), wv2, preferred_element_type=f32) + p["bv2"]
    hl = jnp.maximum(jnp.dot(l, wl1, preferred_element_type=f32) + p["bl1"], 0.0)
    el = jnp.dot(hl.astype(compute_dtype), wl2, preferred_element_type=f32) + p["bl2"]

    vn = ev * jax.lax.rsqrt(jnp.maximum(jnp.sum(ev * ev, -1, keepdims=True), 1e-24))
    ln = el * jax.lax.rsqrt(jnp.maximum(jnp.sum(el * el, -1, keepdims=True), 1e-24))
    ln_rows = jnp.repeat(ln, m, axis=0)                       # (n*m, J)
    cos = jnp.sum(vn * ln_rows, axis=-1).reshape(n, m) * masks
    return (jnp.max(cos, axis=1, keepdims=True),
            jnp.argmax(cos, axis=1).astype(jnp.int32))


if __name__ == "__main__":
    n, m = 4, 8
    vis_dim, lang_dim, jemb_dim = 32, 64, 32

    key = jax.random.PRNGKey(0)
    k_v, k_l, k_m, k_p = jax.random.split(key, 4)

    visual_input = jax.random.normal(k_v, (n, m, vis_dim), jnp.float32)
    lang_input = jax.random.normal(k_l, (n, lang_dim), jnp.float32)
    masks = (jax.random.uniform(k_m, (n, m)) > 0.3).astype(jnp.float32)
    params = make_params(k_p, vis_dim, lang_dim, jemb_dim)

    cossim, ixs = relation_matching(visual_input, lang_input, masks, params)
    jax.block_until_ready(cossim)
    jax.block_until_ready(ixs)

    cossim_ref, ixs_ref = reference(visual_input, lang_input, masks, params)
    assert cossim.shape == (n, 1) and ixs.shape == (n,)
    assert jnp.allclose(cossim, cossim_ref, atol=2e-3, rtol=2e-3)
    assert jnp.array_equal(ixs, ixs_ref)

    print("KERNEL_OK")
</pallas_src>

<mosaic_0001>
module attributes {stable_mosaic.version = 11 : i64} {
  func.func @_relation_matching_kernel(%arg0: i32, %arg1: memref<128x32xbf16, #tpu.memory_space<vmem>>, %arg2: memref<16x64xbf16, #tpu.memory_space<vmem>>, %arg3: memref<16x8xf32, #tpu.memory_space<vmem>>, %arg4: memref<16x128xf32, #tpu.memory_space<vmem>>, %arg5: memref<128x8xf32, #tpu.memory_space<vmem>>, %arg6: memref<32x32xbf16, #tpu.memory_space<vmem>>, %arg7: memref<1x32xf32, #tpu.memory_space<vmem>>, %arg8: memref<32x32xbf16, #tpu.memory_space<vmem>>, %arg9: memref<1x32xf32, #tpu.memory_space<vmem>>, %arg10: memref<64x32xbf16, #tpu.memory_space<vmem>>, %arg11: memref<1x32xf32, #tpu.memory_space<vmem>>, %arg12: memref<32x32xbf16, #tpu.memory_space<vmem>>, %arg13: memref<1x32xf32, #tpu.memory_space<vmem>>, %arg14: memref<16x1xf32, #tpu.memory_space<vmem>>, %arg15: memref<16x1xi32, #tpu.memory_space<vmem>>) attributes {dimension_semantics = [#tpu.dimension_semantics<parallel>], iteration_bounds = array<i64: 1>, scalar_prefetch = 0 : i64, scratch_operands = 0 : i64, tpu.core_type = #tpu.core_type<tc>, window_params = [{transform_indices = @transform_0, window_bounds = array<i64: 128, 32>}, {transform_indices = @transform_1, window_bounds = array<i64: 16, 64>}, {transform_indices = @transform_2, window_bounds = array<i64: 16, 8>}, {pipeline_mode = #tpu.pipeline_mode<synchronous>, transform_indices = @transform_3, window_bounds = array<i64: 16, 128>}, {pipeline_mode = #tpu.pipeline_mode<synchronous>, transform_indices = @transform_4, window_bounds = array<i64: 128, 8>}, {pipeline_mode = #tpu.pipeline_mode<synchronous>, transform_indices = @transform_5, window_bounds = array<i64: 32, 32>}, {pipeline_mode = #tpu.pipeline_mode<synchronous>, transform_indices = @transform_6, window_bounds = array<i64: 1, 32>}, {pipeline_mode = #tpu.pipeline_mode<synchronous>, transform_indices = @transform_7, window_bounds = array<i64: 32, 32>}, {pipeline_mode = #tpu.pipeline_mode<synchronous>, transform_indices = @transform_8, window_bounds = array<i64: 1, 32>}, {pipeline_mode = #tpu.pipeline_mode<synchronous>, transform_indices = @transform_9, window_bounds = array<i64: 64, 32>}, {pipeline_mode = #tpu.pipeline_mode<synchronous>, transform_indices = @transform_10, window_bounds = array<i64: 1, 32>}, {pipeline_mode = #tpu.pipeline_mode<synchronous>, transform_indices = @transform_11, window_bounds = array<i64: 32, 32>}, {pipeline_mode = #tpu.pipeline_mode<synchronous>, transform_indices = @transform_12, window_bounds = array<i64: 1, 32>}, {transform_indices = @transform_13, window_bounds = array<i64: 16, 1>}, {transform_indices = @transform_14, window_bounds = array<i64: 16, 1>}]} {
    %c0 = arith.constant 0 : index
    %c0_0 = arith.constant 0 : index
    %0 = vector.load %arg1[%c0, %c0_0] : memref<128x32xbf16, #tpu.memory_space<vmem>>, vector<128x32xbf16>
    %c0_1 = arith.constant 0 : index
    %c0_2 = arith.constant 0 : index
    %1 = vector.load %arg2[%c0_1, %c0_2] : memref<16x64xbf16, #tpu.memory_space<vmem>>, vector<16x64xbf16>
    %c0_3 = arith.constant 0 : index
    %c0_4 = arith.constant 0 : index
    %2 = vector.load %arg6[%c0_3, %c0_4] : memref<32x32xbf16, #tpu.memory_space<vmem>>, vector<32x32xbf16>
    %cst = arith.constant dense<0.000000e+00> : vector<128x32xf32>
    %3 = tpu.matmul %0, %2, %cst {dimension_numbers = #tpu.dot_dimension_numbers<[1], [0], [0], [1], [0, 0, 1, 1], [], []>} : vector<128x32xbf16>, vector<32x32xbf16>, vector<128x32xf32> -> vector<128x32xf32>
    %c0_5 = arith.constant 0 : index
    %c0_6 = arith.constant 0 : index
    %4 = vector.load %arg7[%c0_5, %c0_6] : memref<1x32xf32, #tpu.memory_space<vmem>>, vector<1x32xf32>
    %5 = vector.broadcast %4 : vector<1x32xf32> to vector<128x32xf32>
    %6 = arith.addf %3, %5 : vector<128x32xf32>
    %cst_7 = arith.constant 0.000000e+00 : f32
    %7 = vector.broadcast %cst_7 : f32 to vector<128x32xf32>
    %8 = arith.maximumf %6, %7 : vector<128x32xf32>
    %9 = arith.truncf %8 : vector<128x32xf32> to vector<128x32xbf16>
    %c0_8 = arith.constant 0 : index
    %c0_9 = arith.constant 0 : index
    %10 = vector.load %arg8[%c0_8, %c0_9] : memref<32x32xbf16, #tpu.memory_space<vmem>>, vector<32x32xbf16>
    %cst_10 = arith.constant dense<0.000000e+00> : vector<128x32xf32>
    %11 = tpu.matmul %9, %10, %cst_10 {dimension_numbers = #tpu.dot_dimension_numbers<[1], [0], [0], [1], [0, 0, 1, 1], [], []>} : vector<128x32xbf16>, vector<32x32xbf16>, vector<128x32xf32> -> vector<128x32xf32>
    %c0_11 = arith.constant 0 : index
    %c0_12 = arith.constant 0 : index
    %12 = vector.load %arg9[%c0_11, %c0_12] : memref<1x32xf32, #tpu.memory_space<vmem>>, vector<1x32xf32>
    %13 = vector.broadcast %12 : vector<1x32xf32> to vector<128x32xf32>
    %14 = arith.addf %11, %13 : vector<128x32xf32>
    %c0_13 = arith.constant 0 : index
    %c0_14 = arith.constant 0 : index
    %15 = vector.load %arg10[%c0_13, %c0_14] : memref<64x32xbf16, #tpu.memory_space<vmem>>, vector<64x32xbf16>
    %cst_15 = arith.constant dense<0.000000e+00> : vector<16x32xf32>
    %16 = tpu.matmul %1, %15, %cst_15 {dimension_numbers = #tpu.dot_dimension_numbers<[1], [0], [0], [1], [0, 0, 1, 1], [], []>} : vector<16x64xbf16>, vector<64x32xbf16>, vector<16x32xf32> -> vector<16x32xf32>
    %c0_16 = arith.constant 0 : index
    %c0_17 = arith.constant 0 : index
    %17 = vector.load %arg11[%c0_16, %c0_17] : memref<1x32xf32, #tpu.memory_space<vmem>>, vector<1x32xf32>
    %18 = vector.broadcast %17 : vector<1x32xf32> to vector<16x32xf32>
    %19 = arith.addf %16, %18 : vector<16x32xf32>
    %cst_18 = arith.constant 0.000000e+00 : f32
    %20 = vector.broadcast %cst_18 : f32 to vector<16x32xf32>
    %21 = arith.maximumf %19, %20 : vector<16x32xf32>
    %22 = arith.truncf %21 : vector<16x32xf32> to vector<16x32xbf16>
    %c0_19 = arith.constant 0 : index
    %c0_20 = arith.constant 0 : index
    %23 = vector.load %arg12[%c0_19, %c0_20] : memref<32x32xbf16, #tpu.memory_space<vmem>>, vector<32x32xbf16>
    %cst_21 = arith.constant dense<0.000000e+00> : vector<16x32xf32>
    %24 = tpu.matmul %22, %23, %cst_21 {dimension_numbers = #tpu.dot_dimension_numbers<[1], [0], [0], [1], [0, 0, 1, 1], [], []>} : vector<16x32xbf16>, vector<32x32xbf16>, vector<16x32xf32> -> vector<16x32xf32>
    %c0_22 = arith.constant 0 : index
    %c0_23 = arith.constant 0 : index
    %25 = vector.load %arg13[%c0_22, %c0_23] : memref<1x32xf32, #tpu.memory_space<vmem>>, vector<1x32xf32>
    %26 = vector.broadcast %25 : vector<1x32xf32> to vector<16x32xf32>
    %27 = arith.addf %24, %26 : vector<16x32xf32>
    %28 = arith.mulf %14, %14 : vector<128x32xf32>
    %cst_24 = arith.constant dense<0.000000e+00> : vector<128xf32>
    %29 = vector.multi_reduction <add>, %28, %cst_24 [1] : vector<128x32xf32> to vector<128xf32>
    %30 = vector.shape_cast %29 : vector<128xf32> to vector<128x1xf32>
    %cst_25 = arith.constant 1.000000e-24 : f32
    %31 = vector.broadcast %cst_25 : f32 to vector<128x1xf32>
    %32 = arith.maximumf %30, %31 : vector<128x1xf32>
    %33 = math.rsqrt %32 : vector<128x1xf32>
    %34 = vector.broadcast %33 : vector<128x1xf32> to vector<128x32xf32>
    %35 = arith.mulf %14, %34 : vector<128x32xf32>
    %36 = arith.mulf %27, %27 : vector<16x32xf32>
    %cst_26 = arith.constant dense<0.000000e+00> : vector<16xf32>
    %37 = vector.multi_reduction <add>, %36, %cst_26 [1] : vector<16x32xf32> to vector<16xf32>
    %38 = vector.shape_cast %37 : vector<16xf32> to vector<16x1xf32>
    %cst_27 = arith.constant 1.000000e-24 : f32
    %39 = vector.broadcast %cst_27 : f32 to vector<16x1xf32>
    %40 = arith.maximumf %38, %39 : vector<16x1xf32>
    %41 = math.rsqrt %40 : vector<16x1xf32>
    %42 = vector.broadcast %41 : vector<16x1xf32> to vector<16x32xf32>
    %43 = arith.mulf %27, %42 : vector<16x32xf32>
    %cst_28 = arith.constant dense<0.000000e+00> : vector<16x128xf32>
    %44 = tpu.matmul %43, %35, %cst_28 {dimension_numbers = #tpu.dot_dimension_numbers<[1], [1], [0], [0], [0, 0, 1, 0], [], []>} : vector<16x32xf32>, vector<128x32xf32>, vector<16x128xf32> -> vector<16x128xf32>
    %c0_29 = arith.constant 0 : index
    %c0_30 = arith.constant 0 : index
    %45 = vector.load %arg4[%c0_29, %c0_30] : memref<16x128xf32, #tpu.memory_space<vmem>>, vector<16x128xf32>
    %46 = arith.mulf %44, %45 : vector<16x128xf32>
    %c0_31 = arith.constant 0 : index
    %c0_32 = arith.constant 0 : index
    %47 = vector.load %arg5[%c0_31, %c0_32] : memref<128x8xf32, #tpu.memory_space<vmem>>, vector<128x8xf32>
    %cst_33 = arith.constant dense<0.000000e+00> : vector<16x8xf32>
    %48 = tpu.matmul %46, %47, %cst_33 {dimension_numbers = #tpu.dot_dimension_numbers<[1], [0], [0], [1], [0, 0, 1, 1], [], []>} : vector<16x128xf32>, vector<128x8xf32>, vector<16x8xf32> -> vector<16x8xf32>
    %c0_34 = arith.constant 0 : index
    %c0_35 = arith.constant 0 : index
    %49 = vector.load %arg3[%c0_34, %c0_35] : memref<16x8xf32, #tpu.memory_space<vmem>>, vector<16x8xf32>
    %50 = arith.mulf %49, %48 : vector<16x8xf32>
    %cst_36 = arith.constant dense<0xFF800000> : vector<16xf32>
    %51 = vector.multi_reduction <maximumf>, %50, %cst_36 [1] : vector<16x8xf32> to vector<16xf32>
    %52 = vector.shape_cast %51 : vector<16xf32> to vector<16x1xf32>
    %53 = tpu.iota {dimensions = array<i32: 1>} : vector<16x8xi32>
    %54 = vector.broadcast %52 : vector<16x1xf32> to vector<16x8xf32>
    %55 = arith.cmpf oeq, %50, %54 : vector<16x8xf32>
    %c8_i32 = arith.constant 8 : i32
    %56 = vector.broadcast %c8_i32 : i32 to vector<16x8xi32>
    %57 = arith.select %55, %53, %56 : vector<16x8xi1>, vector<16x8xi32>
    %cst_37 = arith.constant dense<2147483647> : vector<16xi32>
    %58 = vector.multi_reduction <minsi>, %57, %cst_37 [1] : vector<16x8xi32> to vector<16xi32>
    %59 = vector.shape_cast %58 : vector<16xi32> to vector<16x1xi32>
    %c0_38 = arith.constant 0 : index
    %c0_39 = arith.constant 0 : index
    %60 = vector.load %arg14[%c0_38, %c0_39] : memref<16x1xf32, #tpu.memory_space<vmem>>, vector<16x1xf32>
    tpu.vector_store %arg14[%c0_38, %c0_39], %52 {strides = array<i32>} : memref<16x1xf32, #tpu.memory_space<vmem>>, vector<16x1xf32>,
    %c0_40 = arith.constant 0 : index
    %c0_41 = arith.constant 0 : index
    %61 = vector.load %arg15[%c0_40, %c0_41] : memref<16x1xi32, #tpu.memory_space<vmem>>, vector<16x1xi32>
    tpu.vector_store %arg15[%c0_40, %c0_41], %59 {strides = array<i32>} : memref<16x1xi32, #tpu.memory_space<vmem>>, vector<16x1xi32>,
    return
  }
  func.func @transform_0(%arg0: i32) -> (i32, i32) {
    %c0_i32 = arith.constant 0 : i32
    %c0_i32_0 = arith.constant 0 : i32
    return %arg0, %c0_i32 : i32, i32
  }
  func.func @transform_1(%arg0: i32) -> (i32, i32) {
    %c0_i32 = arith.constant 0 : i32
    %c0_i32_0 = arith.constant 0 : i32
    return %arg0, %c0_i32 : i32, i32
  }
  func.func @transform_2(%arg0: i32) -> (i32, i32) {
    %c0_i32 = arith.constant 0 : i32
    %c0_i32_0 = arith.constant 0 : i32
    return %arg0, %c0_i32 : i32, i32
  }
  func.func @transform_3(%arg0: i32) -> (i32, i32) {
    %c0_i32 = arith.constant 0 : i32
    %c0_i32_0 = arith.constant 0 : i32
    %c0_i32_1 = arith.constant 0 : i32
    return %c0_i32, %c0_i32_0 : i32, i32
  }
  func.func @transform_4(%arg0: i32) -> (i32, i32) {
    %c0_i32 = arith.constant 0 : i32
    %c0_i32_0 = arith.constant 0 : i32
    %c0_i32_1 = arith.constant 0 : i32
    return %c0_i32, %c0_i32_0 : i32, i32
  }
  func.func @transform_5(%arg0: i32) -> (i32, i32) {
    %c0_i32 = arith.constant 0 : i32
    %c0_i32_0 = arith.constant 0 : i32
    %c0_i32_1 = arith.constant 0 : i32
    return %c0_i32, %c0_i32_0 : i32, i32
  }
  func.func @transform_6(%arg0: i32) -> (i32, i32) {
    %c0_i32 = arith.constant 0 : i32
    %c0_i32_0 = arith.constant 0 : i32
    %c0_i32_1 = arith.constant 0 : i32
    return %c0_i32, %c0_i32_0 : i32, i32
  }
  func.func @transform_7(%arg0: i32) -> (i32, i32) {
    %c0_i32 = arith.constant 0 : i32
    %c0_i32_0 = arith.constant 0 : i32
    %c0_i32_1 = arith.constant 0 : i32
    return %c0_i32, %c0_i32_0 : i32, i32
  }
  func.func @transform_8(%arg0: i32) -> (i32, i32) {
    %c0_i32 = arith.constant 0 : i32
    %c0_i32_0 = arith.constant 0 : i32
    %c0_i32_1 = arith.constant 0 : i32
    return %c0_i32, %c0_i32_0 : i32, i32
  }
  func.func @transform_9(%arg0: i32) -> (i32, i32) {
    %c0_i32 = arith.constant 0 : i32
    %c0_i32_0 = arith.constant 0 : i32
    %c0_i32_1 = arith.constant 0 : i32
    return %c0_i32, %c0_i32_0 : i32, i32
  }
  func.func @transform_10(%arg0: i32) -> (i32, i32) {
    %c0_i32 = arith.constant 0 : i32
    %c0_i32_0 = arith.constant 0 : i32
    %c0_i32_1 = arith.constant 0 : i32
    return %c0_i32, %c0_i32_0 : i32, i32
  }
  func.func @transform_11(%arg0: i32) -> (i32, i32) {
    %c0_i32 = arith.constant 0 : i32
    %c0_i32_0 = arith.constant 0 : i32
    %c0_i32_1 = arith.constant 0 : i32
    return %c0_i32, %c0_i32_0 : i32, i32
  }
  func.func @transform_12(%arg0: i32) -> (i32, i32) {
    %c0_i32 = arith.constant 0 : i32
    %c0_i32_0 = arith.constant 0 : i32
    %c0_i32_1 = arith.constant 0 : i32
    return %c0_i32, %c0_i32_0 : i32, i32
  }
  func.func @transform_13(%arg0: i32) -> (i32, i32) {
    %c0_i32 = arith.constant 0 : i32
    %c0_i32_0 = arith.constant 0 : i32
    return %arg0, %c0_i32 : i32, i32
  }
  func.func @transform_14(%arg0: i32) -> (i32, i32) {
    %c0_i32 = arith.constant 0 : i32
    %c0_i32_0 = arith.constant 0 : i32
    return %arg0, %c0_i32 : i32, i32
  }
}

</mosaic_0001>

<llo_original>
// kernel: tpu_custom_call.1
$region0: #{tpu_custom_call.1}
  #allocation0 [shape = 'u32[]', space=smem, size = 0x4, offset = 0x4, fixed_abs, tag = 'smem constant byte address 0x4 - core index']
  #allocation1 [shape = 'u32[72,128]{1,0:T(1,128)}', space=vmem, size = 0x9000, scoped, tag = 'internal scratch']
  %s0 = inlined_call_operand.vmem [shape: bf16[128,32], index: 0, kind: input, shape index: {}]
  %s1 = inlined_call_operand.vmem [shape: bf16[16,64], index: 1, kind: input, shape index: {}]
  %s2 = inlined_call_operand.vmem [shape: f32[16,8], index: 2, kind: input, shape index: {}]
  %s3 = inlined_call_operand.vmem [shape: f32[16,128], index: 3, kind: input, shape index: {}]
  %s4 = inlined_call_operand.vmem [shape: f32[128,8], index: 4, kind: input, shape index: {}]
  %s5 = inlined_call_operand.vmem [shape: bf16[32,32], index: 5, kind: input, shape index: {}]
  %s6 = inlined_call_operand.vmem [shape: f32[1,32], index: 6, kind: input, shape index: {}]
  %s7 = inlined_call_operand.vmem [shape: bf16[32,32], index: 7, kind: input, shape index: {}]
  %s8 = inlined_call_operand.vmem [shape: f32[1,32], index: 8, kind: input, shape index: {}]
  %s9 = inlined_call_operand.vmem [shape: bf16[64,32], index: 9, kind: input, shape index: {}]
  %s10 = inlined_call_operand.vmem [shape: f32[1,32], index: 10, kind: input, shape index: {}]
  %s11 = inlined_call_operand.vmem [shape: bf16[32,32], index: 11, kind: input, shape index: {}]
  %s12 = inlined_call_operand.vmem [shape: f32[1,32], index: 12, kind: input, shape index: {}]
  %s13 = inlined_call_operand.vmem [shape: f32[16,1], index: 13, kind: output, shape index: {0}]
  %s14 = inlined_call_operand.vmem [shape: s32[16,1], index: 14, kind: output, shape index: {1}]
  %15 = xla_tuple %s13, %s14
  %s16 = sld [smem:[#allocation0]]
  $region70: #{tpu_custom_call.1} parent=0
    _
  %s18 = ssub.s32 1, %s16
  %s19 = scalar_select 0, %s18, %s16
  // Predicated region
  $region2: #{tpu_custom_call.1} parent=0 // pred_check
    _
  $region3: #{tpu_custom_call.1} parent=0 // pred_check_branch
    %21 = sbr.rel (0) target = $region5
  $region4: #{tpu_custom_call.1} parent=0 // pred_region
    _
  $region5: #{tpu_custom_call.1} parent=0 // pred_fallthru
    _
  // Predicated region
  $region6: #{tpu_custom_call.1} parent=0 // pred_check
    _
  $region7: #{tpu_custom_call.1} parent=0 // pred_check_branch
    %23 = sbr.rel (0) target = $region9
  $region8: #{tpu_custom_call.1} parent=0 // pred_region
    _
  $region9: #{tpu_custom_call.1} parent=0 // pred_fallthru
    _
  // Predicated region
  $region10: #{tpu_custom_call.1} parent=0 // pred_check
    _
  $region11: #{tpu_custom_call.1} parent=0 // pred_check_branch
    %25 = sbr.rel (0) target = $region13
  $region12: #{tpu_custom_call.1} parent=0 // pred_region
    _
  $region13: #{tpu_custom_call.1} parent=0 // pred_fallthru
    _
  // Predicated region
  $region14: #{tpu_custom_call.1} parent=0 // pred_check
    _
  $region15: #{tpu_custom_call.1} parent=0 // pred_check_branch
    %27 = sbr.rel (0) target = $region17
  $region16: #{tpu_custom_call.1} parent=0 // pred_region
    _
  $region17: #{tpu_custom_call.1} parent=0 // pred_fallthru
    _
  // Predicated region
  $region18: #{tpu_custom_call.1} parent=0 // pred_check
    _
  $region19: #{tpu_custom_call.1} parent=0 // pred_check_branch
    %29 = sbr.rel (0) target = $region21
  $region20: #{tpu_custom_call.1} parent=0 // pred_region
    _
  $region21: #{tpu_custom_call.1} parent=0 // pred_fallthru
    _
  // Predicated region
  $region22: #{tpu_custom_call.1} parent=0 // pred_check
    _
  $region23: #{tpu_custom_call.1} parent=0 // pred_check_branch
    %31 = sbr.rel (0) target = $region25
  $region24: #{tpu_custom_call.1} parent=0 // pred_region
    _
  $region25: #{tpu_custom_call.1} parent=0 // pred_fallthru
    _
  // Predicated region
  $region26: #{tpu_custom_call.1} parent=0 // pred_check
    _
  $region27: #{tpu_custom_call.1} parent=0 // pred_check_branch
    %33 = sbr.rel (0) target = $region29
  $region28: #{tpu_custom_call.1} parent=0 // pred_region
    _
  $region29: #{tpu_custom_call.1} parent=0 // pred_fallthru
    _
  // Predicated region
  $region30: #{tpu_custom_call.1} parent=0 // pred_check
    _
  $region31: #{tpu_custom_call.1} parent=0 // pred_check_branch
    %35 = sbr.rel (0) target = $region33
  $region32: #{tpu_custom_call.1} parent=0 // pred_region
    _
  $region33: #{tpu_custom_call.1} parent=0 // pred_fallthru
    _
  // Predicated region
  $region34: #{tpu_custom_call.1} parent=0 // pred_check
    _
  $region35: #{tpu_custom_call.1} parent=0 // pred_check_branch
    %37 = sbr.rel (0) target = $region37
  $region36: #{tpu_custom_call.1} parent=0 // pred_region
    _
  $region37: #{tpu_custom_call.1} parent=0 // pred_fallthru
    _
  // Predicated region
  $region38: #{tpu_custom_call.1} parent=0 // pred_check
    _
  $region39: #{tpu_custom_call.1} parent=0 // pred_check_branch
    %39 = sbr.rel (0) target = $region41
  $region40: #{tpu_custom_call.1} parent=0 // pred_region
    _
  $region41: #{tpu_custom_call.1} parent=0 // pred_fallthru
    _
  // Predicated region
  $region42: #{tpu_custom_call.1} parent=0 // pred_check
    _
  $region43: #{tpu_custom_call.1} parent=0 // pred_check_branch
    %41 = sbr.rel (0) target = $region45
  $region44: #{tpu_custom_call.1} parent=0 // pred_region
    _
  $region45: #{tpu_custom_call.1} parent=0 // pred_fallthru
    _
  // Predicated region
  $region46: #{tpu_custom_call.1} parent=0 // pred_check
    _
  $region47: #{tpu_custom_call.1} parent=0 // pred_check_branch
    %43 = sbr.rel (0) target = $region49
  $region48: #{tpu_custom_call.1} parent=0 // pred_region
    _
  $region49: #{tpu_custom_call.1} parent=0 // pred_fallthru
    _
  // Predicated region
  $region50: #{tpu_custom_call.1} parent=0 // pred_check
    _
  $region51: #{tpu_custom_call.1} parent=0 // pred_check_branch
    %45 = sbr.rel (0) target = $region53
  $region52: #{tpu_custom_call.1} parent=0 // pred_region
    _
  $region53: #{tpu_custom_call.1} parent=0 // pred_fallthru
    _
  %v47 = vld [vmem:[%s0] sm:$0xf]
  %v48 = vld [vmem:[%s0 + $0x4] sm:$0xf]
  %v49 = vld [vmem:[%s0 + $0x8] sm:$0xf]
  %v50 = vld [vmem:[%s0 + $0xc] sm:$0xf]
  %v51 = vld [vmem:[%s0 + $0x10] sm:$0xf]
  %v52 = vld [vmem:[%s0 + $0x14] sm:$0xf]
  %v53 = vld [vmem:[%s0 + $0x18] sm:$0xf]
  %v54 = vld [vmem:[%s0 + $0x1c] sm:$0xf]
  %v55 = vld [vmem:[%s0 + $0x20] sm:$0xf]
  %v56 = vld [vmem:[%s0 + $0x24] sm:$0xf]
  %v57 = vld [vmem:[%s0 + $0x28] sm:$0xf]
  %v58 = vld [vmem:[%s0 + $0x2c] sm:$0xf]
  %v59 = vld [vmem:[%s0 + $0x30] sm:$0xf]
  %v60 = vld [vmem:[%s0 + $0x34] sm:$0xf]
  %v61 = vld [vmem:[%s0 + $0x38] sm:$0xf]
  %v62 = vld [vmem:[%s0 + $0x3c] sm:$0xf]
  %v63 = vld [vmem:[%s1] sm:$0xf]
  %v64 = vld [vmem:[%s1 + $0x4] sm:$0xf]
  %v65 = vld [vmem:[%s5] sm:$0xf]
  %v66 = vld [vmem:[%s5 + $0x4] sm:$0xf]
  %v67 = vld [vmem:[%s5 + $0x8] sm:$0xf]
  %v68 = vld [vmem:[%s5 + $0xc] sm:$0xf]
  %v69 = vld [vmem:[%s6] sm:$0x1]
  %v71 = vperm.slane %v69, 0
  %v89 = vunpack.c.l.b16 %v47
  %v90 = vunpack.c.l.b16 %v48
  %v91 = vunpack.c.l.b16 %v49
  %v92 = vunpack.c.l.b16 %v50
  %v93 = vunpack.c.l.b16 %v51
  %v94 = vunpack.c.l.b16 %v52
  %v95 = vunpack.c.l.b16 %v53
  %v96 = vunpack.c.l.b16 %v54
  %v97 = vunpack.c.l.b16 %v55
  %v98 = vunpack.c.l.b16 %v56
  %v99 = vunpack.c.l.b16 %v57
  %v100 = vunpack.c.l.b16 %v58
  %v101 = vunpack.c.l.b16 %v59
  %v102 = vunpack.c.l.b16 %v60
  %v103 = vunpack.c.l.b16 %v61
  %v104 = vunpack.c.l.b16 %v62
  %v105 = vpack.c.b16 %v90, %v89
  %v106 = vpack.c.b16 %v92, %v91
  %v107 = vpack.c.b16 %v94, %v93
  %v108 = vpack.c.b16 %v96, %v95
  %v109 = vpack.c.b16 %v98, %v97
  %v110 = vpack.c.b16 %v100, %v99
  %v111 = vpack.c.b16 %v102, %v101
  %v112 = vpack.c.b16 %v104, %v103
  %v117 = vunpack.c.l.b16 %v65
  %v118 = vunpack.c.l.b16 %v66
  %v119 = vunpack.c.l.b16 %v67
  %v120 = vunpack.c.l.b16 %v68
  %v121 = vpack.c.b16 %v118, %v117
  %v122 = vpack.c.b16 %v120, %v119
  %vm125 = vcmask 261120
  %v127 = vsel %vm125, %v105, 0
  %v130 = vsel %vm125, %v106, 0
  %v133 = vsel %vm125, %v107, 0
  %v136 = vsel %vm125, %v108, 0
  %v139 = vsel %vm125, %v109, 0
  %v142 = vsel %vm125, %v110, 0
  %v145 = vsel %vm125, %v111, 0
  %v148 = vsel %vm125, %v112, 0
  %150 = vmatpush.bf16.msra.mxu0 0
  %151 = vmatpush.bf16.msra.mxu0 0
  %152 = vmatpush.bf16.msra.mxu0 0
  %153 = vmatpush.bf16.msra.mxu0 0
  %154 = vmatpush.bf16.msra.mxu0 0
  %155 = vmatpush.bf16.msra.mxu0 0
  %156 = vmatpush.bf16.msra.mxu0 %v122
  %157 = vmatpush.bf16.msra.mxu0 %v121
  %158 = vmatmul.bf16.gmra.mxu0 %v127
  %v159 = vpop.f32.mrf.mxu0
  %v160 = vadd.f32 %v71, %v159
  %v161 = vpop.f32.mrf.mxu0
  %v162 = vadd.f32 %v71, %v161
  %163 = vmatmul.bf16.gmra.mxu0 %v130
  %v164 = vpop.f32.mrf.mxu0
  %v165 = vadd.f32 %v71, %v164
  %v166 = vpop.f32.mrf.mxu0
  %v167 = vadd.f32 %v71, %v166
  %168 = vmatmul.bf16.gmra.mxu0 %v133
  %v169 = vpop.f32.mrf.mxu0
  %v170 = vadd.f32 %v71, %v169
  %v171 = vpop.f32.mrf.mxu0
  %v172 = vadd.f32 %v71, %v171
  %173 = vmatmul.bf16.gmra.mxu0 %v136
  %v174 = vpop.f32.mrf.mxu0
  %v175 = vadd.f32 %v71, %v174
  %v176 = vpop.f32.mrf.mxu0
  %v177 = vadd.f32 %v71, %v176
  %178 = vmatmul.bf16.gmra.mxu0 %v139
  %v179 = vpop.f32.mrf.mxu0
  %v180 = vadd.f32 %v71, %v179
  %v181 = vpop.f32.mrf.mxu0
  %v182 = vadd.f32 %v71, %v181
  %183 = vmatmul.bf16.gmra.mxu0 %v142
  %v184 = vpop.f32.mrf.mxu0
  %v185 = vadd.f32 %v71, %v184
  %v186 = vpop.f32.mrf.mxu0
  %v187 = vadd.f32 %v71, %v186
  %188 = vmatmul.bf16.gmra.mxu0 %v145
  %v189 = vpop.f32.mrf.mxu0
  %v190 = vadd.f32 %v71, %v189
  %v191 = vpop.f32.mrf.mxu0
  %v192 = vadd.f32 %v71, %v191
  %193 = vmatmul.bf16.gmra.mxu0 %v148
  %v194 = vpop.f32.mrf.mxu0
  %v195 = vadd.f32 %v71, %v194
  %v196 = vpop.f32.mrf.mxu0
  %v197 = vadd.f32 %v71, %v196
  %198 = vdwg.mxu0
  %v199 = vmax.f32 %v160, 0.0
  %v200 = vmax.f32 %v162, 0.0
  %v201 = vmax.f32 %v165, 0.0
  %v202 = vmax.f32 %v167, 0.0
  %v203 = vmax.f32 %v170, 0.0
  %v204 = vmax.f32 %v172, 0.0
  %v205 = vmax.f32 %v175, 0.0
  %v206 = vmax.f32 %v177, 0.0
  %v207 = vmax.f32 %v180, 0.0
  %v208 = vmax.f32 %v182, 0.0
  %v209 = vmax.f32 %v185, 0.0
  %v210 = vmax.f32 %v187, 0.0
  %v211 = vmax.f32 %v190, 0.0
  %v212 = vmax.f32 %v192, 0.0
  %v213 = vmax.f32 %v195, 0.0
  %v214 = vmax.f32 %v197, 0.0
  %v215 = vpack.c.bf16 %v200, %v199
  %v216 = vpack.c.bf16 %v202, %v201
  %v217 = vpack.c.bf16 %v204, %v203
  %v218 = vpack.c.bf16 %v206, %v205
  %v219 = vpack.c.bf16 %v208, %v207
  %v220 = vpack.c.bf16 %v210, %v209
  %v221 = vpack.c.bf16 %v212, %v211
  %v222 = vpack.c.bf16 %v214, %v213
  %v223 = vld [vmem:[%s7] sm:$0xf]
  %v224 = vld [vmem:[%s7 + $0x4] sm:$0xf]
  %v225 = vld [vmem:[%s7 + $0x8] sm:$0xf]
  %v226 = vld [vmem:[%s7 + $0xc] sm:$0xf]
  %v227 = vld [vmem:[%s8] sm:$0x1]
  %v229 = vperm.slane %v227, 0
  %v235 = vunpack.c.l.b16 %v223
  %v236 = vunpack.c.l.b16 %v224
  %v237 = vunpack.c.l.b16 %v225
  %v238 = vunpack.c.l.b16 %v226
  %v239 = vpack.c.b16 %v236, %v235
  %v240 = vpack.c.b16 %v238, %v237
  %v244 = vsel %vm125, %v215, 0
  %v247 = vsel %vm125, %v216, 0
  %v250 = vsel %vm125, %v217, 0
  %v253 = vsel %vm125, %v218, 0
  %v256 = vsel %vm125, %v219, 0
  %v259 = vsel %vm125, %v220, 0
  %v262 = vsel %vm125, %v221, 0
  %v265 = vsel %vm125, %v222, 0
  %267 = vmatpush.bf16.msra.mxu0 0
  %268 = vmatpush.bf16.msra.mxu0 0
  %269 = vmatpush.bf16.msra.mxu0 0
  %270 = vmatpush.bf16.msra.mxu0 0
  %271 = vmatpush.bf16.msra.mxu0 0
  %272 = vmatpush.bf16.msra.mxu0 0
  %273 = vmatpush.bf16.msra.mxu0 %v240
  %274 = vmatpush.bf16.msra.mxu0 %v239
  %275 = vmatmul.bf16.gmra.mxu0 %v244
  %v276 = vpop.f32.mrf.mxu0
  %v277 = vadd.f32 %v229, %v276
  %v278 = vpop.f32.mrf.mxu0
  %v279 = vadd.f32 %v229, %v278
  %280 = vmatmul.bf16.gmra.mxu0 %v247
  %v281 = vpop.f32.mrf.mxu0
  %v282 = vadd.f32 %v229, %v281
  %v283 = vpop.f32.mrf.mxu0
  %v284 = vadd.f32 %v229, %v283
  %285 = vmatmul.bf16.gmra.mxu0 %v250
  %v286 = vpop.f32.mrf.mxu0
  %v287 = vadd.f32 %v229, %v286
  %v288 = vpop.f32.mrf.mxu0
  %v289 = vadd.f32 %v229, %v288
  %290 = vmatmul.bf16.gmra.mxu0 %v253
  %v291 = vpop.f32.mrf.mxu0
  %v292 = vadd.f32 %v229, %v291
  %v293 = vpop.f32.mrf.mxu0
  %v294 = vadd.f32 %v229, %v293
  %295 = vmatmul.bf16.gmra.mxu0 %v256
  %v296 = vpop.f32.mrf.mxu0
  %v297 = vadd.f32 %v229, %v296
  %v298 = vpop.f32.mrf.mxu0
  %v299 = vadd.f32 %v229, %v298
  %300 = vmatmul.bf16.gmra.mxu0 %v259
  %v301 = vpop.f32.mrf.mxu0
  %v302 = vadd.f32 %v229, %v301
  %v303 = vpop.f32.mrf.mxu0
  %v304 = vadd.f32 %v229, %v303
  %305 = vmatmul.bf16.gmra.mxu0 %v262
  %v306 = vpop.f32.mrf.mxu0
  %v307 = vadd.f32 %v229, %v306
  %v308 = vpop.f32.mrf.mxu0
  %v309 = vadd.f32 %v229, %v308
  %310 = vmatmul.bf16.gmra.mxu0 %v265
  %v311 = vpop.f32.mrf.mxu0
  %v312 = vadd.f32 %v229, %v311
  %v313 = vpop.f32.mrf.mxu0
  %v314 = vadd.f32 %v229, %v313
  %315 = vdwg.mxu0
  %v316 = vld [vmem:[%s9] sm:$0xf]
  %v317 = vld [vmem:[%s9 + $0x4] sm:$0xf]
  %v318 = vld [vmem:[%s9 + $0x8] sm:$0xf]
  %v319 = vld [vmem:[%s9 + $0xc] sm:$0xf]
  %v320 = vld [vmem:[%s9 + $0x10] sm:$0xf]
  %v321 = vld [vmem:[%s9 + $0x14] sm:$0xf]
  %v322 = vld [vmem:[%s9 + $0x18] sm:$0xf]
  %v323 = vld [vmem:[%s9 + $0x1c] sm:$0xf]
  %v324 = vld [vmem:[%s10] sm:$0x1]
  %v326 = vperm.slane %v324, 0
  %v330 = vunpack.c.l.b16 %v63
  %v331 = vunpack.c.l.b16 %v64
  %v332 = vpack.c.b16 %v331, %v330
  %v341 = vunpack.c.l.b16 %v316
  %v342 = vunpack.c.l.b16 %v317
  %v343 = vunpack.c.l.b16 %v318
  %v344 = vunpack.c.l.b16 %v319
  %v345 = vunpack.c.l.b16 %v320
  %v346 = vunpack.c.l.b16 %v321
  %v347 = vunpack.c.l.b16 %v322
  %v348 = vunpack.c.l.b16 %v323
  %v349 = vpack.c.b16 %v342, %v341
  %v350 = vpack.c.b16 %v344, %v343
  %v351 = vpack.c.b16 %v346, %v345
  %v352 = vpack.c.b16 %v348, %v347
  %vm357 = vcmask 523264
  %v359 = vsel %vm357, %v332, 0
  %361 = vmatpush.bf16.msra.mxu0 0
  %362 = vmatpush.bf16.msra.mxu0 0
  %363 = vmatpush.bf16.msra.mxu0 0
  %364 = vmatpush.bf16.msra.mxu0 0
  %365 = vmatpush.bf16.msra.mxu0 %v352
  %366 = vmatpush.bf16.msra.mxu0 %v351
  %367 = vmatpush.bf16.msra.mxu0 %v350
  %368 = vmatpush.bf16.msra.mxu0 %v349
  %369 = vmatmul.bf16.gmra.mxu0 %v359
  %v370 = vpop.f32.mrf.mxu0
  %v371 = vadd.f32 %v326, %v370
  %v372 = vpop.f32.mrf.mxu0
  %v373 = vadd.f32 %v326, %v372
  %374 = vdwg.mxu0
  %v375 = vmax.f32 %v371, 0.0
  %v376 = vmax.f32 %v373, 0.0
  %v377 = vpack.c.bf16 %v376, %v375
  %v378 = vld [vmem:[%s11] sm:$0xf]
  %v379 = vld [vmem:[%s11 + $0x4] sm:$0xf]
  %v380 = vld [vmem:[%s11 + $0x8] sm:$0xf]
  %v381 = vld [vmem:[%s11 + $0xc] sm:$0xf]
  %v382 = vld [vmem:[%s12] sm:$0x1]
  %v384 = vperm.slane %v382, 0
  %v390 = vunpack.c.l.b16 %v378
  %v391 = vunpack.c.l.b16 %v379
  %v392 = vunpack.c.l.b16 %v380
  %v393 = vunpack.c.l.b16 %v381
  %v394 = vpack.c.b16 %v391, %v390
  %v395 = vpack.c.b16 %v393, %v392
  %v399 = vsel %vm125, %v377, 0
  %401 = vmatpush.bf16.msra.mxu0 0
  %402 = vmatpush.bf16.msra.mxu0 0
  %403 = vmatpush.bf16.msra.mxu0 0
  %404 = vmatpush.bf16.msra.mxu0 0
  %405 = vmatpush.bf16.msra.mxu0 0
  %406 = vmatpush.bf16.msra.mxu0 0
  %407 = vmatpush.bf16.msra.mxu0 %v395
  %408 = vmatpush.bf16.msra.mxu0 %v394
  %409 = vmatmul.bf16.gmra.mxu0 %v399
  %v410 = vpop.f32.mrf.mxu0
  %v411 = vadd.f32 %v384, %v410
  %v412 = vpop.f32.mrf.mxu0
  %v413 = vadd.f32 %v384, %v412
  %414 = vdwg.mxu0
  %v415 = vmul.f32 %v277, %v277
  %v416 = vmul.f32 %v279, %v279
  %v417 = vmul.f32 %v282, %v282
  %v418 = vmul.f32 %v284, %v284
  %v419 = vmul.f32 %v287, %v287
  %v420 = vmul.f32 %v289, %v289
  %v421 = vmul.f32 %v292, %v292
  %v422 = vmul.f32 %v294, %v294
  %v423 = vmul.f32 %v297, %v297
  %v424 = vmul.f32 %v299, %v299
  %v425 = vmul.f32 %v302, %v302
  %v426 = vmul.f32 %v304, %v304
  %v427 = vmul.f32 %v307, %v307
  %v428 = vmul.f32 %v309, %v309
  %v429 = vmul.f32 %v312, %v312
  %v430 = vmul.f32 %v314, %v314
  %v431 = vsel %vm125, %v415, 0.0
  %432 = vadd.xlane.f32.xlu0 %v431
  %v433 = vpop.xlane.xlu0 %432
  %v434 = vsel %vm125, %v416, 0.0
  %435 = vadd.xlane.f32.xlu0 %v434
  %v436 = vpop.xlane.xlu0 %435
  %v437 = vsel %vm125, %v417, 0.0
  %438 = vadd.xlane.f32.xlu0 %v437
  %v439 = vpop.xlane.xlu0 %438
  %v440 = vsel %vm125, %v418, 0.0
  %441 = vadd.xlane.f32.xlu0 %v440
  %v442 = vpop.xlane.xlu0 %441
  %v443 = vsel %vm125, %v419, 0.0
  %444 = vadd.xlane.f32.xlu0 %v443
  %v445 = vpop.xlane.xlu0 %444
  %v446 = vsel %vm125, %v420, 0.0
  %447 = vadd.xlane.f32.xlu0 %v446
  %v448 = vpop.xlane.xlu0 %447
  %v449 = vsel %vm125, %v421, 0.0
  %450 = vadd.xlane.f32.xlu0 %v449
  %v451 = vpop.xlane.xlu0 %450
  %v452 = vsel %vm125, %v422, 0.0
  %453 = vadd.xlane.f32.xlu0 %v452
  %v454 = vpop.xlane.xlu0 %453
  %v455 = vsel %vm125, %v423, 0.0
  %456 = vadd.xlane.f32.xlu0 %v455
  %v457 = vpop.xlane.xlu0 %456
  %v458 = vsel %vm125, %v424, 0.0
  %459 = vadd.xlane.f32.xlu0 %v458
  %v460 = vpop.xlane.xlu0 %459
  %v461 = vsel %vm125, %v425, 0.0
  %462 = vadd.xlane.f32.xlu0 %v461
  %v463 = vpop.xlane.xlu0 %462
  %v464 = vsel %vm125, %v426, 0.0
  %465 = vadd.xlane.f32.xlu0 %v464
  %v466 = vpop.xlane.xlu0 %465
  %v467 = vsel %vm125, %v427, 0.0
  %468 = vadd.xlane.f32.xlu0 %v467
  %v469 = vpop.xlane.xlu0 %468
  %v470 = vsel %vm125, %v428, 0.0
  %471 = vadd.xlane.f32.xlu0 %v470
  %v472 = vpop.xlane.xlu0 %471
  %v473 = vsel %vm125, %v429, 0.0
  %474 = vadd.xlane.f32.xlu0 %v473
  %v475 = vpop.xlane.xlu0 %474
  %v476 = vsel %vm125, %v430, 0.0
  %477 = vadd.xlane.f32.xlu0 %v476
  %v478 = vpop.xlane.xlu0 %477
  %v479 = vmax.f32 %v433, 1e-24
  %v480 = vmax.f32 %v436, 1e-24
  %v481 = vmax.f32 %v439, 1e-24
  %v482 = vmax.f32 %v442, 1e-24
  %v483 = vmax.f32 %v445, 1e-24
  %v484 = vmax.f32 %v448, 1e-24
  %v485 = vmax.f32 %v451, 1e-24
  %v486 = vmax.f32 %v454, 1e-24
  %v487 = vmax.f32 %v457, 1e-24
  %v488 = vmax.f32 %v460, 1e-24
  %v489 = vmax.f32 %v463, 1e-24
  %v490 = vmax.f32 %v466, 1e-24
  %v491 = vmax.f32 %v469, 1e-24
  %v492 = vmax.f32 %v472, 1e-24
  %v493 = vmax.f32 %v475, 1e-24
  %v494 = vmax.f32 %v478, 1e-24
  %v495 = vrsqrt.pop %v479
  %v496 = vmul.f32 %v495, %v479
  %v497 = vmul.f32 %v496, %v495
  %v498 = vmul.f32 0.5, %v497
  %v499 = vsub.f32 1.5, %v498
  %v500 = vmul.f32 %v495, %v499
  %vm501 = vweird.f32 %v479
  %vm502 = vweird.f32 %v495
  %vm503 = vmor %vm501, %vm502
  %v504 = vsel %vm503, %v495, %v500
  %v505 = vrsqrt.pop %v480
  %v506 = vmul.f32 %v505, %v480
  %v507 = vmul.f32 %v506, %v505
  %v508 = vmul.f32 0.5, %v507
  %v509 = vsub.f32 1.5, %v508
  %v510 = vmul.f32 %v505, %v509
  %vm511 = vweird.f32 %v480
  %vm512 = vweird.f32 %v505
  %vm513 = vmor %vm511, %vm512
  %v514 = vsel %vm513, %v505, %v510
  %v515 = vrsqrt.pop %v481
  %v516 = vmul.f32 %v515, %v481
  %v517 = vmul.f32 %v516, %v515
  %v518 = vmul.f32 0.5, %v517
  %v519 = vsub.f32 1.5, %v518
  %v520 = vmul.f32 %v515, %v519
  %vm521 = vweird.f32 %v481
  %vm522 = vweird.f32 %v515
  %vm523 = vmor %vm521, %vm522
  %v524 = vsel %vm523, %v515, %v520
  %v525 = vrsqrt.pop %v482
  %v526 = vmul.f32 %v525, %v482
  %v527 = vmul.f32 %v526, %v525
  %v528 = vmul.f32 0.5, %v527
  %v529 = vsub.f32 1.5, %v528
  %v530 = vmul.f32 %v525, %v529
  %vm531 = vweird.f32 %v482
  %vm532 = vweird.f32 %v525
  %vm533 = vmor %vm531, %vm532
  %v534 = vsel %vm533, %v525, %v530
  %v535 = vrsqrt.pop %v483
  %v536 = vmul.f32 %v535, %v483
  %v537 = vmul.f32 %v536, %v535
  %v538 = vmul.f32 0.5, %v537
  %v539 = vsub.f32 1.5, %v538
  %v540 = vmul.f32 %v535, %v539
  %vm541 = vweird.f32 %v483
  %vm542 = vweird.f32 %v535
  %vm543 = vmor %vm541, %vm542
  %v544 = vsel %vm543, %v535, %v540
  %v545 = vrsqrt.pop %v484
  %v546 = vmul.f32 %v545, %v484
  %v547 = vmul.f32 %v546, %v545
  %v548 = vmul.f32 0.5, %v547
  %v549 = vsub.f32 1.5, %v548
  %v550 = vmul.f32 %v545, %v549
  %vm551 = vweird.f32 %v484
  %vm552 = vweird.f32 %v545
  %vm553 = vmor %vm551, %vm552
  %v554 = vsel %vm553, %v545, %v550
  %v555 = vrsqrt.pop %v485
  %v556 = vmul.f32 %v555, %v485
  %v557 = vmul.f32 %v556, %v555
  %v558 = vmul.f32 0.5, %v557
  %v559 = vsub.f32 1.5, %v558
  %v560 = vmul.f32 %v555, %v559
  %vm561 = vweird.f32 %v485
  %vm562 = vweird.f32 %v555
  %vm563 = vmor %vm561, %vm562
  %v564 = vsel %vm563, %v555, %v560
  %v565 = vrsqrt.pop %v486
  %v566 = vmul.f32 %v565, %v486
  %v567 = vmul.f32 %v566, %v565
  %v568 = vmul.f32 0.5, %v567
  %v569 = vsub.f32 1.5, %v568
  %v570 = vmul.f32 %v565, %v569
  %vm571 = vweird.f32 %v486
  %vm572 = vweird.f32 %v565
  %vm573 = vmor %vm571, %vm572
  %v574 = vsel %vm573, %v565, %v570
  %v575 = vrsqrt.pop %v487
  %v576 = vmul.f32 %v575, %v487
  %v577 = vmul.f32 %v576, %v575
  %v578 = vmul.f32 0.5, %v577
  %v579 = vsub.f32 1.5, %v578
  %v580 = vmul.f32 %v575, %v579
  %vm581 = vweird.f32 %v487
  %vm582 = vweird.f32 %v575
  %vm583 = vmor %vm581, %vm582
  %v584 = vsel %vm583, %v575, %v580
  %v585 = vrsqrt.pop %v488
  %v586 = vmul.f32 %v585, %v488
  %v587 = vmul.f32 %v586, %v585
  %v588 = vmul.f32 0.5, %v587
  %v589 = vsub.f32 1.5, %v588
  %v590 = vmul.f32 %v585, %v589
  %vm591 = vweird.f32 %v488
  %vm592 = vweird.f32 %v585
  %vm593 = vmor %vm591, %vm592
  %v594 = vsel %vm593, %v585, %v590
  %v595 = vrsqrt.pop %v489
  %v596 = vmul.f32 %v595, %v489
  %v597 = vmul.f32 %v596, %v595
  %v598 = vmul.f32 0.5, %v597
  %v599 = vsub.f32 1.5, %v598
  %v600 = vmul.f32 %v595, %v599
  %vm601 = vweird.f32 %v489
  %vm602 = vweird.f32 %v595
  %vm603 = vmor %vm601, %vm602
  %v604 = vsel %vm603, %v595, %v600
  %v605 = vrsqrt.pop %v490
  %v606 = vmul.f32 %v605, %v490
  %v607 = vmul.f32 %v606, %v605
  %v608 = vmul.f32 0.5, %v607
  %v609 = vsub.f32 1.5, %v608
  %v610 = vmul.f32 %v605, %v609
  %vm611 = vweird.f32 %v490
  %vm612 = vweird.f32 %v605
  %vm613 = vmor %vm611, %vm612
  %v614 = vsel %vm613, %v605, %v610
  %v615 = vrsqrt.pop %v491
  %v616 = vmul.f32 %v615, %v491
  %v617 = vmul.f32 %v616, %v615
  %v618 = vmul.f32 0.5, %v617
  %v619 = vsub.f32 1.5, %v618
  %v620 = vmul.f32 %v615, %v619
  %vm621 = vweird.f32 %v491
  %vm622 = vweird.f32 %v615
  %vm623 = vmor %vm621, %vm622
  %v624 = vsel %vm623, %v615, %v620
  %v625 = vrsqrt.pop %v492
  %v626 = vmul.f32 %v625, %v492
  %v627 = vmul.f32 %v626, %v625
  %v628 = vmul.f32 0.5, %v627
  %v629 = vsub.f32 1.5, %v628
  %v630 = vmul.f32 %v625, %v629
  %vm631 = vweird.f32 %v492
  %vm632 = vweird.f32 %v625
  %vm633 = vmor %vm631, %vm632
  %v634 = vsel %vm633, %v625, %v630
  %v635 = vrsqrt.pop %v493
  %v636 = vmul.f32 %v635, %v493
  %v637 = vmul.f32 %v636, %v635
  %v638 = vmul.f32 0.5, %v637
  %v639 = vsub.f32 1.5, %v638
  %v640 = vmul.f32 %v635, %v639
  %vm641 = vweird.f32 %v493
  %vm642 = vweird.f32 %v635
  %vm643 = vmor %vm641, %vm642
  %v644 = vsel %vm643, %v635, %v640
  %v645 = vrsqrt.pop %v494
  %v646 = vmul.f32 %v645, %v494
  %v647 = vmul.f32 %v646, %v645
  %v648 = vmul.f32 0.5, %v647
  %v649 = vsub.f32 1.5, %v648
  %v650 = vmul.f32 %v645, %v649
  %vm651 = vweird.f32 %v494
  %vm652 = vweird.f32 %v645
  %vm653 = vmor %vm651, %vm652
  %v654 = vsel %vm653, %v645, %v650
  %v655 = vmul.f32 %v277, %v504
  %v656 = vmul.f32 %v279, %v514
  %v657 = vmul.f32 %v282, %v524
  %v658 = vmul.f32 %v284, %v534
  %v659 = vmul.f32 %v287, %v544
  %v660 = vmul.f32 %v289, %v554
  %v661 = vmul.f32 %v292, %v564
  %v662 = vmul.f32 %v294, %v574
  %v663 = vmul.f32 %v297, %v584
  %v664 = vmul.f32 %v299, %v594
  %v665 = vmul.f32 %v302, %v604
  %v666 = vmul.f32 %v304, %v614
  %v667 = vmul.f32 %v307, %v624
  %v668 = vmul.f32 %v309, %v634
  %v669 = vmul.f32 %v312, %v644
  %v670 = vmul.f32 %v314, %v654
  %v671 = vmul.f32 %v411, %v411
  %v672 = vmul.f32 %v413, %v413
  %v673 = vsel %vm125, %v671, 0.0
  %674 = vadd.xlane.f32.xlu0 %v673
  %v675 = vpop.xlane.xlu0 %674
  %v676 = vsel %vm125, %v672, 0.0
  %677 = vadd.xlane.f32.xlu0 %v676
  %v678 = vpop.xlane.xlu0 %677
  %v679 = vmax.f32 %v675, 1e-24
  %v680 = vmax.f32 %v678, 1e-24
  %v681 = vrsqrt.pop %v679
  %v682 = vmul.f32 %v681, %v679
  %v683 = vmul.f32 %v682, %v681
  %v684 = vmul.f32 0.5, %v683
  %v685 = vsub.f32 1.5, %v684
  %v686 = vmul.f32 %v681, %v685
  %vm687 = vweird.f32 %v679
  %vm688 = vweird.f32 %v681
  %vm689 = vmor %vm687, %vm688
  %v690 = vsel %vm689, %v681, %v686
  %v691 = vrsqrt.pop %v680
  %v692 = vmul.f32 %v691, %v680
  %v693 = vmul.f32 %v692, %v691
  %v694 = vmul.f32 0.5, %v693
  %v695 = vsub.f32 1.5, %v694
  %v696 = vmul.f32 %v691, %v695
  %vm697 = vweird.f32 %v680
  %vm698 = vweird.f32 %v691
  %vm699 = vmor %vm697, %vm698
  %v700 = vsel %vm699, %v691, %v696
  %v701 = vmul.f32 %v411, %v690
  %v702 = vmul.f32 %v413, %v700
  %v704 = vsel %vm125, %v701, 0
  %v707 = vsel %vm125, %v702, 0
  %v710 = vsel %vm125, %v655, 0
  %v713 = vsel %vm125, %v656, 0
  %v716 = vsel %vm125, %v657, 0
  %v719 = vsel %vm125, %v658, 0
  %v722 = vsel %vm125, %v659, 0
  %v725 = vsel %vm125, %v660, 0
  %v728 = vsel %vm125, %v661, 0
  %v731 = vsel %vm125, %v662, 0
  %v734 = vsel %vm125, %v663, 0
  %v737 = vsel %vm125, %v664, 0
  %v740 = vsel %vm125, %v665, 0
  %v743 = vsel %vm125, %v666, 0
  %v746 = vsel %vm125, %v667, 0
  %v749 = vsel %vm125, %v668, 0
  %v752 = vsel %vm125, %v669, 0
  %v755 = vsel %vm125, %v670, 0
  %757 = vmatpush.xpose.msra.mxu0 %v755
  %758 = vmatpush.xpose.msra.mxu0 %v752
  %759 = vmatpush.xpose.msra.mxu0 %v749
  %760 = vmatpush.xpose.msra.mxu0 %v746
  %761 = vmatpush.xpose.msra.mxu0 %v743
  %762 = vmatpush.xpose.msra.mxu0 %v740
  %763 = vmatpush.xpose.msra.mxu0 %v737
  %764 = vmatpush.xpose.msra.mxu0 %v734
  %765 = vmatpush.xpose.msra.mxu0 %v731
  %766 = vmatpush.xpose.msra.mxu0 %v728
  %767 = vmatpush.xpose.msra.mxu0 %v725
  %768 = vmatpush.xpose.msra.mxu0 %v722
  %769 = vmatpush.xpose.msra.mxu0 %v719
  %770 = vmatpush.xpose.msra.mxu0 %v716
  %771 = vmatpush.xpose.msra.mxu0 %v713
  %772 = vmatpush.xpose.msra.mxu0 %v710
  %773 = vmatmul.f32.gmra.mxu0 %v704
  %v774 = vpop.f32.mrf.mxu0
  %v775 = vadd.f32 0.0, %v774
  %776 = vmatmul.f32.gmra.mxu0 %v707
  %v777 = vpop.f32.mrf.mxu0
  %v778 = vadd.f32 0.0, %v777
  %779 = vdwg.mxu0
  %v780 = vld [vmem:[%s3] sm:$0xff]
  %v781 = vld [vmem:[%s3 + $0x8] sm:$0xff]
  %v782 = vmul.f32 %v775, %v780
  %v783 = vmul.f32 %v778, %v781
  %v784 = vld [vmem:[%s4] sm:$0xff]
  %v785 = vld [vmem:[%s4 + $0x8] sm:$0xff]
  %v786 = vld [vmem:[%s4 + $0x10] sm:$0xff]
  %v787 = vld [vmem:[%s4 + $0x18] sm:$0xff]
  %v788 = vld [vmem:[%s4 + $0x20] sm:$0xff]
  %v789 = vld [vmem:[%s4 + $0x28] sm:$0xff]
  %v790 = vld [vmem:[%s4 + $0x30] sm:$0xff]
  %v791 = vld [vmem:[%s4 + $0x38] sm:$0xff]
  %v792 = vld [vmem:[%s4 + $0x40] sm:$0xff]
  %v793 = vld [vmem:[%s4 + $0x48] sm:$0xff]
  %v794 = vld [vmem:[%s4 + $0x50] sm:$0xff]
  %v795 = vld [vmem:[%s4 + $0x58] sm:$0xff]
  %v796 = vld [vmem:[%s4 + $0x60] sm:$0xff]
  %v797 = vld [vmem:[%s4 + $0x68] sm:$0xff]
  %v798 = vld [vmem:[%s4 + $0x70] sm:$0xff]
  %v799 = vld [vmem:[%s4 + $0x78] sm:$0xff]
  %800 = vmatpush.msra.mxu0 %v799
  %801 = vmatpush.msra.mxu0 %v798
  %802 = vmatpush.msra.mxu0 %v797
  %803 = vmatpush.msra.mxu0 %v796
  %804 = vmatpush.msra.mxu0 %v795
  %805 = vmatpush.msra.mxu0 %v794
  %806 = vmatpush.msra.mxu0 %v793
  %807 = vmatpush.msra.mxu0 %v792
  %808 = vmatpush.msra.mxu0 %v791
  %809 = vmatpush.msra.mxu0 %v790
  %810 = vmatpush.msra.mxu0 %v789
  %811 = vmatpush.msra.mxu0 %v788
  %812 = vmatpush.msra.mxu0 %v787
  %813 = vmatpush.msra.mxu0 %v786
  %814 = vmatpush.msra.mxu0 %v785
  %815 = vmatpush.msra.mxu0 %v784
  %816 = vmatmul.f32.gmra.mxu0 %v782
  %v817 = vpop.f32.mrf.mxu0
  %v818 = vadd.f32 0.0, %v817
  %819 = vmatmul.f32.gmra.mxu0 %v783
  %v820 = vpop.f32.mrf.mxu0
  %v821 = vadd.f32 0.0, %v820
  %822 = vdwg.mxu0
  %v823 = vld [vmem:[%s2] sm:$0xff]
  %v824 = vld [vmem:[%s2 + $0x8] sm:$0xff]
  %v825 = vmul.f32 %v823, %v818
  %v826 = vmul.f32 %v824, %v821
  %vm827 = vcmask 64512
  %v828 = vsel %vm827, %v825, -inf
  %829 = vmax.xlane.f32.xlu0 %v828
  %v830 = vpop.xlane.xlu0 %829
  %v831 = vsel %vm827, %v826, -inf
  %832 = vmax.xlane.f32.xlu0 %v831
  %v833 = vpop.xlane.xlu0 %832
  %v834 = vlaneseq
  %v835 = vand.u32 %v834, 127
  %vm836 = vcmp.eq.f32.partialorder %v825, %v830
  %vm837 = vcmp.eq.f32.partialorder %v826, %v833
  %v838 = vsel %vm836, %v835, 8
  %v839 = vsel %vm837, %v835, 8
  %v840 = vsel %vm827, %v838, 2147483647
  %v841 = vand.u32 %v840, 65535
  %v842 = vshra.s32 %v840, 16
  %v843 = vcvt.s32.f32 %v841
  %v844 = vcvt.s32.f32 %v842
  %845 = vmin.xlane.f32.xlu0 %v844
  %v846 = vpop.xlane.xlu0 %845
  %vm847 = vcmp.eq.f32.partialorder %v844, %v846
  %v848 = vsel %vm847, %v843, inf
  %849 = vmin.xlane.f32.xlu0 %v848
  %v850 = vpop.xlane.xlu0 %849
  %v851 = vcvt.f32.s32 %v850
  %v852 = vcvt.f32.s32 %v846
  %v853 = vshll.u32 %v852, 16
  %v854 = vadd.s32 %v853, %v851
  %v855 = vsel %vm827, %v839, 2147483647
  %v856 = vand.u32 %v855, 65535
  %v857 = vshra.s32 %v855, 16
  %v858 = vcvt.s32.f32 %v856
  %v859 = vcvt.s32.f32 %v857
  %860 = vmin.xlane.f32.xlu0 %v859
  %v861 = vpop.xlane.xlu0 %860
  %vm862 = vcmp.eq.f32.partialorder %v859, %v861
  %v863 = vsel %vm862, %v858, inf
  %864 = vmin.xlane.f32.xlu0 %v863
  %v865 = vpop.xlane.xlu0 %864
  %v866 = vcvt.f32.s32 %v865
  %v867 = vcvt.f32.s32 %v861
  %v868 = vshll.u32 %v867, 16
  %v869 = vadd.s32 %v868, %v866
  %vm870 = vcmask 7168
  %871 = vst.msk [vmem:[%s13] sm:$0xff] %vm870, %v830
  %872 = vst.msk [vmem:[%s13 + $0x8] sm:$0xff] %vm870, %v833
  %873 = vst.msk [vmem:[%s14] sm:$0xff] %vm870, %v854
  %874 = vst.msk [vmem:[%s14 + $0x8] sm:$0xff] %vm870, %v869
  // Predicated region
  $region54: #{tpu_custom_call.1} parent=0 // pred_check
    _
  $region55: #{tpu_custom_call.1} parent=0 // pred_check_branch
    %876 = sbr.rel (0) target = $region57
  $region56: #{tpu_custom_call.1} parent=0 // pred_region
    _
  $region57: #{tpu_custom_call.1} parent=0 // pred_fallthru
    _
  // Predicated region
  $region58: #{tpu_custom_call.1} parent=0 // pred_check
    _
  $region59: #{tpu_custom_call.1} parent=0 // pred_check_branch
    %878 = sbr.rel (0) target = $region61
  $region60: #{tpu_custom_call.1} parent=0 // pred_region
    _
  $region61: #{tpu_custom_call.1} parent=0 // pred_fallthru
    _
  // Predicated region
  $region62: #{tpu_custom_call.1} parent=0 // pred_check
    _
  $region63: #{tpu_custom_call.1} parent=0 // pred_check_branch
    %880 = sbr.rel (0) target = $region65
  $region64: #{tpu_custom_call.1} parent=0 // pred_region
    _
  $region65: #{tpu_custom_call.1} parent=0 // pred_fallthru
    _
  // Predicated region
  $region66: #{tpu_custom_call.1} parent=0 // pred_check
    _
  $region67: #{tpu_custom_call.1} parent=0 // pred_check_branch
    %882 = sbr.rel (0) target = $region69
  $region68: #{tpu_custom_call.1} parent=0 // pred_region
    _
  $region69: #{tpu_custom_call.1} parent=0 // pred_fallthru
    _

</llo_original>
